<compile_context>
chip_gen: v7x
topology: tpu7x:2x2x1
jax: 0.10.0
libtpu: 0.0.40
codegen_flags: <defaults>
</compile_context>

<pallas_src>
import functools

import jax
import jax.numpy as jnp
from jax.experimental import pallas as pl
from jax.experimental.pallas import tpu as pltpu


def _round_up(x, m):
    return (x + m - 1) // m * m


def _citation_kernel(content_ref, refs_ref, w_ref, attn_ref,
                     m_sc, l_sc, acc_sc, *, n_refs, tile_r, num_tiles):
    r = pl.program_id(0)

    @pl.when(r == 0)
    def _init():
        m_sc[...] = jnp.full(m_sc.shape, -jnp.inf, dtype=m_sc.dtype)
        l_sc[...] = jnp.zeros(l_sc.shape, dtype=l_sc.dtype)
        acc_sc[...] = jnp.zeros(acc_sc.shape, dtype=acc_sc.dtype)

    # Keep the explicit f32 upcast (required for exp/softmax on v5e VPU/EUP).
    content = content_ref[...].astype(jnp.float32)      # (1, D)
    refs = refs_ref[...].astype(jnp.float32)            # (tile_r, D)

    # Sim scores for this tile: VPU broadcast-mul + lane reduce -> (tile_r, 1).
    s = jnp.sum(content * refs, axis=1, keepdims=True)

    # Mask padded rows (global row id >= n_refs) so they drop out of softmax.
    row_id = jax.lax.broadcasted_iota(jnp.int32, s.shape, 0) + r * tile_r
    s = jnp.where(row_id < n_refs, s, -jnp.inf)

    # Stash raw scores in the resident attention output buffer; normalized in
    # one shot at the final step once the global max / denominator are known.
    if num_tiles == 1:
        attn_ref[...] = s
    else:
        start = pl.multiple_of(r * tile_r, tile_r)
        attn_ref[pl.ds(start, tile_r), :] = s

    # Online softmax update.
    m_prev = m_sc[...]                                           # (1, 1)
    m_new = jnp.maximum(m_prev, jnp.max(s, axis=0, keepdims=True))
    corr = jnp.exp(m_prev - m_new)                               # (1, 1)
    p = jnp.exp(s - m_new)                                       # (tile_r, 1)
    l_sc[...] = corr * l_sc[...] + jnp.sum(p, axis=0, keepdims=True)
    # Weighted sum: VPU broadcast-mul + sublane reduce -> (1, D); no MXU.
    acc_sc[...] = corr * acc_sc[...] + jnp.sum(p * refs, axis=0, keepdims=True)
    m_sc[...] = m_new

    @pl.when(r == num_tiles - 1)
    def _finalize():
        l = l_sc[...]
        inv_l = pl.reciprocal(l, approx=True)
        inv_l = inv_l * (2.0 - l * inv_l)          # one Newton refinement step
        w_ref[...] = (acc_sc[...] * inv_l).astype(w_ref.dtype)
        attn_ref[...] = jnp.exp(attn_ref[...] - m_sc[...]) * inv_l


def citation_parser(content_embedding, refs_embeddings,
                    return_attn_distribution=False):
    """Pallas equivalent of CitationParser.forward.

    content_embedding: (1, D); refs_embeddings: (R, D).
    Returns weighted_refs (1, D) [+ attn_distrib.T (R, 1), float32].
    """
    B, D = content_embedding.shape
    R, D2 = refs_embeddings.shape
    assert B == 1 and D == D2, "broadcast in the reference module requires B == 1"

    # ---- choose the R tile --------------------------------------------------
    tile_r = min(512, _round_up(R, 8))
    # Keep the double-buffered refs tile <= ~8 MiB so everything fits easily
    # inside the 32 MiB scoped VMEM budget (and v7x's 64 MiB physical VMEM).
    while tile_r > 8 and 2 * tile_r * D * 4 > 8 * 1024 * 1024:
        tile_r = _round_up(tile_r // 2, 8)
    r_pad = _round_up(R, tile_r)
    n_tiles = r_pad // tile_r

    refs_p = refs_embeddings
    if r_pad != R:
        refs_p = jnp.pad(refs_embeddings, ((0, r_pad - R), (0, 0)))

    kernel = functools.partial(_citation_kernel, n_refs=R, tile_r=tile_r,
                               num_tiles=n_tiles)

    cost = pl.CostEstimate(
        flops=4 * R * D,                       # scores + weighted sum
        transcendentals=r_pad + 4 * n_tiles,   # exp (tiles + finalize + corr)
        bytes_accessed=4 * (R * D + 2 * D + R),
    )

    weighted, attn_col = pl.pallas_call(
        kernel,
        grid=(n_tiles,),
        in_specs=[
            pl.BlockSpec((1, D), lambda r: (0, 0)),        # content (resident)
            pl.BlockSpec((tile_r, D), lambda r: (r, 0)),   # refs, streamed over R
        ],
        out_specs=(
            pl.BlockSpec((1, D), lambda r: (0, 0)),        # weighted (lane dense)
            pl.BlockSpec((r_pad, 1), lambda r: (0, 0)),    # attn scores (resident)
        ),
        out_shape=(
            jax.ShapeDtypeStruct((1, D), content_embedding.dtype),
            jax.ShapeDtypeStruct((r_pad, 1), jnp.float32),
        ),
        scratch_shapes=[
            pltpu.VMEM((1, 1), jnp.float32),   # running max
            pltpu.VMEM((1, 1), jnp.float32),   # running denominator
            pltpu.VMEM((1, D), jnp.float32),   # running weighted sum
        ],
        compiler_params=pltpu.CompilerParams(
            dimension_semantics=("arbitrary",),   # softmax reduction over R tiles
            vmem_limit_bytes=32 * 1024 * 1024,
        ),
        cost_estimate=cost,
    )(content_embedding, refs_p)

    # TODO(synk): for many (content, refs) pairs at tiny R*D, batch pairs into
    # one call (extra "parallel" grid axis) so launch overhead amortizes and
    # both v7x TensorCores are used; semantics here are a single pair (B == 1).
    attn_t = attn_col[:R]          # (R, 1) == attn_distrib.T, float32
    if return_attn_distribution:
        return weighted, attn_t
    return weighted


def _reference(content_embedding, refs_embeddings):
    c = content_embedding.astype(jnp.float32)
    r = refs_embeddings.astype(jnp.float32)
    sim = c @ r.T
    attn = jax.nn.softmax(sim, axis=1)
    weighted = jnp.sum(r * attn.T, axis=0, keepdims=True)
    return weighted.astype(content_embedding.dtype), attn.T


if __name__ == "__main__":
    key = jax.random.PRNGKey(0)

    # (R, D): single tile, masked padding within a tile, multi-tile online softmax.
    for R, D in [(8, 128), (13, 256), (1040, 128)]:
        key, k1, k2 = jax.random.split(key, 3)
        content = jax.random.normal(k1, (1, D), dtype=jnp.float32)
        refs = jax.random.normal(k2, (R, D), dtype=jnp.float32)

        weighted, attn_t = citation_parser(content, refs,
                                           return_attn_distribution=True)
        jax.block_until_ready((weighted, attn_t))

        ref_w, ref_a = _reference(content, refs)
        assert weighted.shape == (1, D)
        assert attn_t.shape == (R, 1)
        assert jnp.allclose(weighted, ref_w, atol=1e-4, rtol=1e-4), (R, D)
        assert jnp.allclose(attn_t, ref_a, atol=1e-5, rtol=1e-4), (R, D)

    print("KERNEL_OK")
</pallas_src>

<mosaic_0001>
module attributes {stable_mosaic.version = 11 : i64} {
  func.func @_citation_kernel(%arg0: i32, %arg1: memref<1x128xf32, #tpu.memory_space<vmem>>, %arg2: memref<8x128xf32, #tpu.memory_space<vmem>>, %arg3: memref<1x128xf32, #tpu.memory_space<vmem>>, %arg4: memref<8x1xf32, #tpu.memory_space<vmem>>, %arg5: memref<1x1xf32, #tpu.memory_space<vmem>>, %arg6: memref<1x1xf32, #tpu.memory_space<vmem>>, %arg7: memref<1x128xf32, #tpu.memory_space<vmem>>) attributes {dimension_semantics = [#tpu.dimension_semantics<arbitrary>], iteration_bounds = array<i64: 1>, scalar_prefetch = 0 : i64, scratch_operands = 3 : i64, tpu.core_type = #tpu.core_type<tc>, window_params = [{pipeline_mode = #tpu.pipeline_mode<synchronous>, transform_indices = @transform_0, window_bounds = array<i64: 1, 128>}, {transform_indices = @transform_1, window_bounds = array<i64: 8, 128>}, {pipeline_mode = #tpu.pipeline_mode<synchronous>, transform_indices = @transform_2, window_bounds = array<i64: 1, 128>}, {pipeline_mode = #tpu.pipeline_mode<synchronous>, transform_indices = @transform_3, window_bounds = array<i64: 8, 1>}]} {
    %c0_i32 = arith.constant 0 : i32
    %0 = arith.cmpi eq, %arg0, %c0_i32 : i32
    %1 = arith.extui %0 : i1 to i32
    %c0_i32_0 = arith.constant 0 : i32
    %2 = arith.cmpi ne, %1, %c0_i32_0 : i32
    scf.if %2 {
      %cst_25 = arith.constant 0xFF800000 : f32
      %46 = vector.broadcast %cst_25 : f32 to vector<1x1xf32>
      %c0_26 = arith.constant 0 : index
      %c0_27 = arith.constant 0 : index
      %47 = vector.load %arg5[%c0_26, %c0_27] : memref<1x1xf32, #tpu.memory_space<vmem>>, vector<1x1xf32>
      tpu.vector_store %arg5[%c0_26, %c0_27], %46 {strides = array<i32>} : memref<1x1xf32, #tpu.memory_space<vmem>>, vector<1x1xf32>,
      %cst_28 = arith.constant 0.000000e+00 : f32
      %48 = vector.broadcast %cst_28 : f32 to vector<1x1xf32>
      %c0_29 = arith.constant 0 : index
      %c0_30 = arith.constant 0 : index
      %49 = vector.load %arg6[%c0_29, %c0_30] : memref<1x1xf32, #tpu.memory_space<vmem>>, vector<1x1xf32>
      tpu.vector_store %arg6[%c0_29, %c0_30], %48 {strides = array<i32>} : memref<1x1xf32, #tpu.memory_space<vmem>>, vector<1x1xf32>,
      %cst_31 = arith.constant 0.000000e+00 : f32
      %50 = vector.broadcast %cst_31 : f32 to vector<1x128xf32>
      %c0_32 = arith.constant 0 : index
      %c0_33 = arith.constant 0 : index
      %51 = vector.load %arg7[%c0_32, %c0_33] : memref<1x128xf32, #tpu.memory_space<vmem>>, vector<1x128xf32>
      tpu.vector_store %arg7[%c0_32, %c0_33], %50 {strides = array<i32>} : memref<1x128xf32, #tpu.memory_space<vmem>>, vector<1x128xf32>,
    } else {
    }
    %c0 = arith.constant 0 : index
    %c0_1 = arith.constant 0 : index
    %3 = vector.load %arg1[%c0, %c0_1] : memref<1x128xf32, #tpu.memory_space<vmem>>, vector<1x128xf32>
    %c0_2 = arith.constant 0 : index
    %c0_3 = arith.constant 0 : index
    %4 = vector.load %arg2[%c0_2, %c0_3] : memref<8x128xf32, #tpu.memory_space<vmem>>, vector<8x128xf32>
    %5 = vector.broadcast %3 : vector<1x128xf32> to vector<8x128xf32>
    %6 = arith.mulf %5, %4 : vector<8x128xf32>
    %cst = arith.constant dense<0.000000e+00> : vector<8xf32>
    %7 = vector.multi_reduction <add>, %6, %cst [1] : vector<8x128xf32> to vector<8xf32>
    %8 = vector.shape_cast %7 : vector<8xf32> to vector<8x1xf32>
    %9 = tpu.iota {dimensions = array<i32: 0>} : vector<8x1xi32>
    %c8_i32 = arith.constant 8 : i32
    %10 = arith.muli %arg0, %c8_i32 : i32
    %11 = vector.broadcast %10 : i32 to vector<8x1xi32>
    %12 = arith.addi %9, %11 : vector<8x1xi32>
    %c8_i32_4 = arith.constant 8 : i32
    %13 = vector.broadcast %c8_i32_4 : i32 to vector<8x1xi32>
    %14 = arith.cmpi slt, %12, %13 : vector<8x1xi32>
    %cst_5 = arith.constant 0xFF800000 : f32
    %15 = vector.broadcast %cst_5 : f32 to vector<8x1xf32>
    %16 = arith.select %14, %8, %15 : vector<8x1xi1>, vector<8x1xf32>
    %c0_6 = arith.constant 0 : index
    %c0_7 = arith.constant 0 : index
    %17 = vector.load %arg4[%c0_6, %c0_7] : memref<8x1xf32, #tpu.memory_space<vmem>>, vector<8x1xf32>
    tpu.vector_store %arg4[%c0_6, %c0_7], %16 {strides = array<i32>} : memref<8x1xf32, #tpu.memory_space<vmem>>, vector<8x1xf32>,
    %c0_8 = arith.constant 0 : index
    %c0_9 = arith.constant 0 : index
    %18 = vector.load %arg5[%c0_8, %c0_9] : memref<1x1xf32, #tpu.memory_space<vmem>>, vector<1x1xf32>
    %cst_10 = arith.constant dense<0xFF800000> : vector<1xf32>
    %19 = vector.multi_reduction <maximumf>, %16, %cst_10 [0] : vector<8x1xf32> to vector<1xf32>
    %20 = vector.shape_cast %19 : vector<1xf32> to vector<1x1xf32>
    %21 = arith.maximumf %18, %20 : vector<1x1xf32>
    %22 = arith.subf %18, %21 : vector<1x1xf32>
    %23 = math.exp %22 : vector<1x1xf32>
    %24 = vector.broadcast %21 : vector<1x1xf32> to vector<8x1xf32>
    %25 = arith.subf %16, %24 : vector<8x1xf32>
    %26 = math.exp %25 : vector<8x1xf32>
    %c0_11 = arith.constant 0 : index
    %c0_12 = arith.constant 0 : index
    %27 = vector.load %arg6[%c0_11, %c0_12] : memref<1x1xf32, #tpu.memory_space<vmem>>, vector<1x1xf32>
    %28 = arith.mulf %23, %27 : vector<1x1xf32>
    %cst_13 = arith.constant dense<0.000000e+00> : vector<1xf32>
    %29 = vector.multi_reduction <add>, %26, %cst_13 [0] : vector<8x1xf32> to vector<1xf32>
    %30 = vector.shape_cast %29 : vector<1xf32> to vector<1x1xf32>
    %31 = arith.addf %28, %30 : vector<1x1xf32>
    %c0_14 = arith.constant 0 : index
    %c0_15 = arith.constant 0 : index
    %32 = vector.load %arg6[%c0_14, %c0_15] : memref<1x1xf32, #tpu.memory_space<vmem>>, vector<1x1xf32>
    tpu.vector_store %arg6[%c0_14, %c0_15], %31 {strides = array<i32>} : memref<1x1xf32, #tpu.memory_space<vmem>>, vector<1x1xf32>,
    %c0_16 = arith.constant 0 : index
    %c0_17 = arith.constant 0 : index
    %33 = vector.load %arg7[%c0_16, %c0_17] : memref<1x128xf32, #tpu.memory_space<vmem>>, vector<1x128xf32>
    %34 = vector.broadcast %23 : vector<1x1xf32> to vector<1x128xf32>
    %35 = arith.mulf %34, %33 : vector<1x128xf32>
    %36 = vector.broadcast %26 : vector<8x1xf32> to vector<8x128xf32>
    %37 = arith.mulf %36, %4 : vector<8x128xf32>
    %cst_18 = arith.constant dense<0.000000e+00> : vector<128xf32>
    %38 = vector.multi_reduction <add>, %37, %cst_18 [0] : vector<8x128xf32> to vector<128xf32>
    %39 = vector.shape_cast %38 : vector<128xf32> to vector<1x128xf32>
    %40 = arith.addf %35, %39 : vector<1x128xf32>
    %c0_19 = arith.constant 0 : index
    %c0_20 = arith.constant 0 : index
    %41 = vector.load %arg7[%c0_19, %c0_20] : memref<1x128xf32, #tpu.memory_space<vmem>>, vector<1x128xf32>
    tpu.vector_store %arg7[%c0_19, %c0_20], %40 {strides = array<i32>} : memref<1x128xf32, #tpu.memory_space<vmem>>, vector<1x128xf32>,
    %c0_21 = arith.constant 0 : index
    %c0_22 = arith.constant 0 : index
    %42 = vector.load %arg5[%c0_21, %c0_22] : memref<1x1xf32, #tpu.memory_space<vmem>>, vector<1x1xf32>
    tpu.vector_store %arg5[%c0_21, %c0_22], %21 {strides = array<i32>} : memref<1x1xf32, #tpu.memory_space<vmem>>, vector<1x1xf32>,
    %c0_i32_23 = arith.constant 0 : i32
    %43 = arith.cmpi eq, %arg0, %c0_i32_23 : i32
    %44 = arith.extui %43 : i1 to i32
    %c0_i32_24 = arith.constant 0 : i32
    %45 = arith.cmpi ne, %44, %c0_i32_24 : i32
    scf.if %45 {
      %c0_25 = arith.constant 0 : index
      %c0_26 = arith.constant 0 : index
      %46 = vector.load %arg6[%c0_25, %c0_26] : memref<1x1xf32, #tpu.memory_space<vmem>>, vector<1x1xf32>
      %47 = tpu.reciprocal %46 {approx = true} : vector<1x1xf32> -> vector<1x1xf32>
      %48 = arith.mulf %46, %47 : vector<1x1xf32>
      %cst_27 = arith.constant 2.000000e+00 : f32
      %49 = vector.broadcast %cst_27 : f32 to vector<1x1xf32>
      %50 = arith.subf %49, %48 : vector<1x1xf32>
      %51 = arith.mulf %47, %50 : vector<1x1xf32>
      %c0_28 = arith.constant 0 : index
      %c0_29 = arith.constant 0 : index
      %52 = vector.load %arg7[%c0_28, %c0_29] : memref<1x128xf32, #tpu.memory_space<vmem>>, vector<1x128xf32>
      %53 = vector.broadcast %51 : vector<1x1xf32> to vector<1x128xf32>
      %54 = arith.mulf %52, %53 : vector<1x128xf32>
      %c0_30 = arith.constant 0 : index
      %c0_31 = arith.constant 0 : index
      %55 = vector.load %arg3[%c0_30, %c0_31] : memref<1x128xf32, #tpu.memory_space<vmem>>, vector<1x128xf32>
      tpu.vector_store %arg3[%c0_30, %c0_31], %54 {strides = array<i32>} : memref<1x128xf32, #tpu.memory_space<vmem>>, vector<1x128xf32>,
      %c0_32 = arith.constant 0 : index
      %c0_33 = arith.constant 0 : index
      %56 = vector.load %arg4[%c0_32, %c0_33] : memref<8x1xf32, #tpu.memory_space<vmem>>, vector<8x1xf32>
      %c0_34 = arith.constant 0 : index
      %c0_35 = arith.constant 0 : index
      %57 = vector.load %arg5[%c0_34, %c0_35] : memref<1x1xf32, #tpu.memory_space<vmem>>, vector<1x1xf32>
      %58 = vector.broadcast %57 : vector<1x1xf32> to vector<8x1xf32>
      %59 = arith.subf %56, %58 : vector<8x1xf32>
      %60 = math.exp %59 : vector<8x1xf32>
      %61 = vector.broadcast %51 : vector<1x1xf32> to vector<8x1xf32>
      %62 = arith.mulf %60, %61 : vector<8x1xf32>
      %c0_36 = arith.constant 0 : index
      %c0_37 = arith.constant 0 : index
      %63 = vector.load %arg4[%c0_36, %c0_37] : memref<8x1xf32, #tpu.memory_space<vmem>>, vector<8x1xf32>
      tpu.vector_store %arg4[%c0_36, %c0_37], %62 {strides = array<i32>} : memref<8x1xf32, #tpu.memory_space<vmem>>, vector<8x1xf32>,
    } else {
    }
    return
  }
  func.func @transform_0(%arg0: i32) -> (i32, i32) {
    %c0_i32 = arith.constant 0 : i32
    %c0_i32_0 = arith.constant 0 : i32
    %c0_i32_1 = arith.constant 0 : i32
    return %c0_i32, %c0_i32_0 : i32, i32
  }
  func.func @transform_1(%arg0: i32) -> (i32, i32) {
    %c0_i32 = arith.constant 0 : i32
    %c0_i32_0 = arith.constant 0 : i32
    return %arg0, %c0_i32 : i32, i32
  }
  func.func @transform_2(%arg0: i32) -> (i32, i32) {
    %c0_i32 = arith.constant 0 : i32
    %c0_i32_0 = arith.constant 0 : i32
    %c0_i32_1 = arith.constant 0 : i32
    return %c0_i32, %c0_i32_0 : i32, i32
  }
  func.func @transform_3(%arg0: i32) -> (i32, i32) {
    %c0_i32 = arith.constant 0 : i32
    %c0_i32_0 = arith.constant 0 : i32
    %c0_i32_1 = arith.constant 0 : i32
    return %c0_i32, %c0_i32_0 : i32, i32
  }
}

</mosaic_0001>

<llo_original>
// kernel: tpu_custom_call.1
$region0: #{tpu_custom_call.1}
  #allocation0 [shape = 'u32[]', space=smem, size = 0x4, offset = 0x4, fixed_abs, tag = 'smem constant byte address 0x4 - core index']
  #allocation1 [shape = 'u32[144,128]{1,0:T(1,128)}', space=vmem, size = 0x12000, scoped, tag = 'internal scratch']
  #allocation2 [shape = 'f32[1,1]{1,0:T(1,128)}', space=vmem, size = 0x200, scoped, tag = 'scratch operand']
  #allocation3 [shape = 'f32[1,1]{1,0:T(1,128)}', space=vmem, size = 0x200, scoped, tag = 'scratch operand']
  #allocation4 [shape = 'f32[1,128]{1,0:T(1,128)}', space=vmem, size = 0x200, scoped, tag = 'scratch operand']
  %s0 = inlined_call_operand.hbm [shape: f32[1,128], index: 0, kind: input, shape index: {}]
  %s1 = inlined_call_operand.hbm [shape: f32[8,128], index: 1, kind: input, shape index: {}]
  %s2 = inlined_call_operand.hbm [shape: f32[1,128], index: 2, kind: output, shape index: {0}]
  %s3 = inlined_call_operand.vmem [shape: f32[8,1], index: 3, kind: output, shape index: {1}]
  %4 = xla_tuple %s2, %s3
  %s5 = sld [smem:[#allocation0]]
  $region42: #{tpu_custom_call.1} parent=0
    _
  %s7 = ssub.s32 1, %s5
  %s8 = scalar_select 0, %s7, %s5
  $region1: #{tpu_custom_call.1} parent=0
    #allocation5 [shape = 'u8[512]{0}', space=vmem, size = 0x400, scoped, tag = 'input window, operand 0, single buffered']
    #allocation6 [shape = 's32[1]{0}', space=sflag, size = 0x4, scoped, tag = 'scoped memory for tpu_custom_call.1']
    #allocation7 [shape = 's32[1]{0}', space=sflag, size = 0x4, scoped, tag = 'scoped memory for tpu_custom_call.1']
    #allocation8 [shape = 'u8[4096]{0}', space=vmem, size = 0x1000, scoped, tag = 'input window, operand 1, single buffered']
    #allocation9 [shape = 's32[1]{0}', space=sflag, size = 0x4, scoped, tag = 'scoped memory for tpu_custom_call.1']
    #allocation10 [shape = 'u8[512]{0}', space=vmem, size = 0x400, scoped, tag = 'output window, operand 0, single buffered']
    %9 = vsyncpa [#allocation6], 0
    %10 = vsyncpa [#allocation9], 0
    %11 = vsyncpa [#allocation7], 0
    // Predicated region
    $region2: #{tpu_custom_call.1} parent=1 // pred_check
      _
    $region3: #{tpu_custom_call.1} parent=1 // pred_check_branch
      %13 = sbr.rel (0) target = $region5
    $region4: #{tpu_custom_call.1} parent=1 // pred_region
      %s15 = ssub.s32 16, 16
      %16 = vsyncadd [#allocation6], %s15
      %s18 = sshll.u32 [#allocation5], 4
      %s19 = int_to_ptr.vmem [resolvable:$true] %s18
      %21 = dma.hbm_to_vmem [thread:$0]  %s0, 16, %s19, [#allocation6]
    $region5: #{tpu_custom_call.1} parent=1 // pred_fallthru
      _
    // Predicated region
    $region6: #{tpu_custom_call.1} parent=1 // pred_check
      _
    $region7: #{tpu_custom_call.1} parent=1 // pred_check_branch
      %23 = sbr.rel (0) target = $region9
    $region8: #{tpu_custom_call.1} parent=1 // pred_region
      %s25 = ssub.s32 128, 128
      %26 = vsyncadd [#allocation9], %s25
      %s28 = sshll.u32 [#allocation8], 4
      %s29 = int_to_ptr.vmem [resolvable:$true] %s28
      %31 = dma.hbm_to_vmem [thread:$0]  %s1, 128, %s29, [#allocation9]
    $region9: #{tpu_custom_call.1} parent=1 // pred_fallthru
      _
    // Predicated region
    $region10: #{tpu_custom_call.1} parent=1 // pred_check
      _
    $region11: #{tpu_custom_call.1} parent=1 // pred_check_branch
      %33 = sbr.rel (0) target = $region13
    $region12: #{tpu_custom_call.1} parent=1 // pred_region
      %34 = dma.done [#allocation6], 16
    $region13: #{tpu_custom_call.1} parent=1 // pred_fallthru
      _
    // Predicated region
    $region14: #{tpu_custom_call.1} parent=1 // pred_check
      _
    $region15: #{tpu_custom_call.1} parent=1 // pred_check_branch
      %36 = sbr.rel (0) target = $region17
    $region16: #{tpu_custom_call.1} parent=1 // pred_region
      %37 = dma.done [#allocation9], 128
    $region17: #{tpu_custom_call.1} parent=1 // pred_fallthru
      _
    %p38 = scmp.eq.s32.totalorder 0, 0
    // Predicated region
    $region18: #{tpu_custom_call.1} parent=1 // pred_check
      %p39 = pneg %p38
    $region19: #{tpu_custom_call.1} parent=1 // pred_check_branch
      %41 = sbr.rel (%p39) target = $region21
    $region20: #{tpu_custom_call.1} parent=1 // pred_region
      %vm42 = vcmask 0
      %43 = vst.msk [vmem:[#allocation2] sm:$0x1] %vm42, -inf
      %44 = vst.msk [vmem:[#allocation3] sm:$0x1] %vm42, 0.0
      %45 = vst [vmem:[#allocation4] sm:$0x1] 0.0
    $region21: #{tpu_custom_call.1} parent=1 // pred_fallthru
      _
    %v46 = vld [vmem:[#allocation5] sm:$0x1]
    %v47 = vld [vmem:[#allocation8] sm:$0xff]
    %v49 = vlaneseq
    %v50 = vshrl.u32 %v49, 7
    %v51 = vsub.s32 0, %v50
    %v52 = vrot.slane %v46, %v51
    %v54 = vmul.f32 %v52, %v47
    %55 = vadd.xlane.f32.xlu0 %v54
    %v56 = vpop.xlane.xlu0 %55
    %v57 = vlaneseq
    %v58 = vshrl.u32 %v57, 7
    %s59 = smul.u32 0, 8
    %v60 = vstv %s59
    %v61 = vadd.s32 %v58, %v60
    %vm62 = vcmp.lt.s32.totalorder %v61, 8
    %v63 = vsel %vm62, %v56, -inf
    %vm64 = vcmask 7168
    %65 = vst.msk [vmem:[%s3] sm:$0xff] %vm64, %v63
    %v66 = vld [vmem:[#allocation2] sm:$0x1]
    %v67 = vrot.slane %v63, 4
    %v68 = vmax.f32 %v63, %v67
    %v69 = vrot.slane %v68, 2
    %v70 = vmax.f32 %v68, %v69
    %v71 = vrot.slane %v70, 1
    %v72 = vmax.f32 %v70, %v71
    %v73 = vmax.f32 %v66, %v72
    %v74 = vsub.f32 %v66, %v73
    %v75 = vmul.f32 %v74, 1.442695
    %v76 = vpow.pop %v75
    %v78 = vlaneseq
    %v79 = vshrl.u32 %v78, 7
    %v80 = vsub.s32 0, %v79
    %v81 = vrot.slane %v73, %v80
    %v83 = vsub.f32 %v63, %v81
    %v84 = vmul.f32 %v83, 1.442695
    %v85 = vpow.pop %v84
    %v86 = vld [vmem:[#allocation3] sm:$0x1]
    %v87 = vmul.f32 %v76, %v86
    %v88 = vsel %vm64, %v85, 0.0
    %v89 = vrot.slane %v88, 4
    %v90 = vadd.f32 %v88, %v89
    %v91 = vrot.slane %v90, 2
    %v92 = vadd.f32 %v90, %v91
    %v93 = vrot.slane %v92, 1
    %v94 = vadd.f32 %v92, %v93
    %v95 = vadd.f32 %v87, %v94
    %vm96 = vcmask 0
    %97 = vst.msk [vmem:[#allocation3] sm:$0x1] %vm96, %v95
    %v98 = vld [vmem:[#allocation4] sm:$0x1]
    %100 = vset.pattern.permute.xlu0 0
    %101 = vperm.xlu0 %100, %v76
    %v102 = vpop.permute.xlu0 %101
    %v104 = vlaneseq
    %v105 = vshrl.u32 %v104, 7
    %v106 = vsub.s32 0, %v105
    %v107 = vrot.slane %v102, %v106
    %v108 = vmul.f32 %v107, %v98
    %110 = vset.pattern.permute.xlu0 0
    %111 = vperm.xlu0 %110, %v85
    %v112 = vpop.permute.xlu0 %111
    %v114 = vmul.f32 %v112, %v47
    %v115 = vrot.slane %v114, 4
    %v116 = vadd.f32 %v114, %v115
    %v117 = vrot.slane %v116, 2
    %v118 = vadd.f32 %v116, %v117
    %v119 = vrot.slane %v118, 1
    %v120 = vadd.f32 %v118, %v119
    %v121 = vadd.f32 %v108, %v120
    %122 = vst [vmem:[#allocation4] sm:$0x1] %v121
    %123 = vst.msk [vmem:[#allocation2] sm:$0x1] %vm96, %v73
    // Predicated region
    $region22: #{tpu_custom_call.1} parent=1 // pred_check
      %p124 = pneg %p38
    $region23: #{tpu_custom_call.1} parent=1 // pred_check_branch
      %126 = sbr.rel (%p124) target = $region25
    $region24: #{tpu_custom_call.1} parent=1 // pred_region
      %v127 = vld [vmem:[#allocation3] sm:$0x1]
      %v128 = vrcp.pop %v127
      %v129 = vmul.f32 %v127, %v128
      %v130 = vsub.f32 2.0, %v129
      %v131 = vmul.f32 %v128, %v130
      %v132 = vld [vmem:[#allocation4] sm:$0x1]
      %134 = vset.pattern.permute.xlu0 0
      %135 = vperm.xlu0 %134, %v131
      %v136 = vpop.permute.xlu0 %135
      %v138 = vlaneseq
      %v139 = vshrl.u32 %v138, 7
      %v140 = vsub.s32 0, %v139
      %v141 = vrot.slane %v136, %v140
      %v142 = vmul.f32 %v132, %v141
      %143 = vst [vmem:[#allocation10] sm:$0x1] %v142
      %v144 = vld [vmem:[%s3] sm:$0xff]
      %v145 = vld [vmem:[#allocation2] sm:$0x1]
      %v147 = vlaneseq
      %v148 = vshrl.u32 %v147, 7
      %v149 = vsub.s32 0, %v148
      %v150 = vrot.slane %v145, %v149
      %v152 = vsub.f32 %v144, %v150
      %v153 = vmul.f32 %v152, 1.442695
      %v154 = vpow.pop %v153
      %v155 = vlaneseq
      %v156 = vshrl.u32 %v155, 7
      %v157 = vsub.s32 0, %v156
      %v158 = vrot.slane %v131, %v157
      %v160 = vmul.f32 %v154, %v158
      %161 = vst.msk [vmem:[%s3] sm:$0xff] %vm64, %v160
    $region25: #{tpu_custom_call.1} parent=1 // pred_fallthru
      _
    // Predicated region
    $region26: #{tpu_custom_call.1} parent=1 // pred_check
      _
    $region27: #{tpu_custom_call.1} parent=1 // pred_check_branch
      %163 = sbr.rel (0) target = $region29
    $region28: #{tpu_custom_call.1} parent=1 // pred_region
      %s165 = ssub.s32 16, 16
      %166 = vsyncadd [#allocation7], %s165
      %s168 = sshll.u32 [#allocation10], 4
      %s169 = int_to_ptr.vmem [resolvable:$true] %s168
      %171 = dma.vmem_to_hbm [thread:$0]  %s169, 16, %s2, [#allocation7]
    $region29: #{tpu_custom_call.1} parent=1 // pred_fallthru
      _
    // Predicated region
    $region30: #{tpu_custom_call.1} parent=1 // pred_check
      _
    $region31: #{tpu_custom_call.1} parent=1 // pred_check_branch
      %173 = sbr.rel (0) target = $region33
    $region32: #{tpu_custom_call.1} parent=1 // pred_region
      _
    $region33: #{tpu_custom_call.1} parent=1 // pred_fallthru
      _
    // Predicated region
    $region34: #{tpu_custom_call.1} parent=1 // pred_check
      _
    $region35: #{tpu_custom_call.1} parent=1 // pred_check_branch
      %175 = sbr.rel (0) target = $region37
    $region36: #{tpu_custom_call.1} parent=1 // pred_region
      %176 = dma.done [#allocation7], 16
    $region37: #{tpu_custom_call.1} parent=1 // pred_fallthru
      _
    // Predicated region
    $region38: #{tpu_custom_call.1} parent=1 // pred_check
      _
    $region39: #{tpu_custom_call.1} parent=1 // pred_check_branch
      %178 = sbr.rel (0) target = $region41
    $region40: #{tpu_custom_call.1} parent=1 // pred_region
      _
    $region41: #{tpu_custom_call.1} parent=1 // pred_fallthru
      _
    %179 = vsyncpa [#allocation6], 1
    %180 = vsyncpa [#allocation9], 1
    %181 = vsyncpa [#allocation7], 1

</llo_original>
